<compile_context>
chip_gen: v7x
topology: tpu7x:2x2x1
jax: 0.10.0
libtpu: 0.0.40
codegen_flags: <defaults>
</compile_context>

<pallas_src>
import jax
import jax.numpy as jnp
from jax.experimental import pallas as pl
from jax.experimental.pallas import tpu as pltpu

_LANE = 128


# --------------------------------------------------------------------------
# Kernels
# --------------------------------------------------------------------------
def _fused_resident_kernel(temp_ref, x_ref, w_ref, b_ref, o_ref):
    """Resident-W path: one grid point per batch tile.

    temp_ref : SMEM (1,) f32
    x_ref    : VMEM (tile_b, D)
    w_ref    : VMEM (D, C_pad)      -- constant block index => fetched once
    b_ref    : VMEM (1, C_pad) f32
    o_ref    : VMEM (tile_b, C_pad) f32
    """
    inv_t = 1.0 / temp_ref[0]
    o_ref[...] = (
        (jnp.dot(x_ref[...], w_ref[...], preferred_element_type=jnp.float32)
         + b_ref[...]) * inv_t
    ).astype(o_ref.dtype)


def _fused_ktiled_kernel(temp_ref, x_ref, w_ref, b_ref, o_ref):
    """K-tiled fallback: grid = (batch tiles, K steps), reduction axis last.

    The output tile's block index ignores k, so o_ref stays resident in VMEM
    across the whole reduction — accumulate directly into it (no scratch).
    """
    k = pl.program_id(1)
    partial = jnp.dot(x_ref[...], w_ref[...], preferred_element_type=jnp.float32)

    @pl.when(k == 0)
    def _init():
        o_ref[...] = partial

    @pl.when(k > 0)
    def _accum():
        o_ref[...] += partial

    @pl.when(k == pl.num_programs(1) - 1)
    def _finalize():
        inv_t = 1.0 / temp_ref[0]
        o_ref[...] = ((o_ref[...] + b_ref[...]) * inv_t).astype(o_ref.dtype)


# --------------------------------------------------------------------------
# Helpers
# --------------------------------------------------------------------------
def _pick_tile(n, target, align):
    """Largest multiple of `align` that is <= target and divides n, else n."""
    t = min(target, n)
    t -= t % align
    while t >= align:
        if n % t == 0:
            return t
        t -= align
    return n


def _vmem_cap_bytes():
    """Physical VMEM per core minus ~25% headroom; conservative fallback."""
    try:
        cap = int(pltpu.get_tpu_info().vmem_capacity_bytes)
        return (cap * 3) // 4
    except Exception:
        return 48 << 20  # safe on v7x (64 MiB physical) and below


def prepare_temperature_params(w, b, param_dtype=jnp.float32):
    """One-time parameter prep (NOT per forward call).

    Pads the class dim to a lane-dense multiple of 128 (zero columns -> zero
    logits, sliced off after the kernel) and casts W once.  Returns
    (w_padded [D, C_pad], b_padded [1, C_pad] f32, num_classes).
    """
    D, C = w.shape
    C_pad = ((C + _LANE - 1) // _LANE) * _LANE
    if C_pad != C:
        w = jnp.pad(w, ((0, 0), (0, C_pad - C)))
        b = jnp.pad(b, (0, C_pad - C))
    return w.astype(param_dtype), b.reshape(1, C_pad).astype(jnp.float32), C


# --------------------------------------------------------------------------
# Forward wrapper
# --------------------------------------------------------------------------
def model_with_temperature_forward(
    x, w_pad, b_pad, temperature, num_classes=None,
    *, tile_b=None, tile_k=None, force_k_tiled=False,
):
    """Pallas implementation of ModelWithTemperature.forward.

    x          : [B, D] activations (native dtype — no wrapper-side cast)
    w_pad      : [D, C_pad] from prepare_temperature_params
    b_pad      : [1, C_pad] f32 from prepare_temperature_params
    temperature: [1] f32 (the nn.Parameter, init 1.5)
    Returns scaled logits [B, num_classes] f32.
    """
    B, D = x.shape
    Dw, C_pad = w_pad.shape
    assert D == Dw, (D, Dw)
    assert C_pad % _LANE == 0, C_pad
    if num_classes is None:
        num_classes = C_pad

    x_bytes = jnp.dtype(x.dtype).itemsize
    w_bytes = jnp.dtype(w_pad.dtype).itemsize

    # Sublane packing of the matmul-input dtype (f32:8, bf16:16, int8/fp8:32).
    align_b = {4: 8, 2: 16, 1: 32}.get(x_bytes, 8)

    # ---- batch tiling: ensure >= 2 batch steps when B allows (v7x megacore)
    if tile_b is None:
        target = 512
        if B >= 2 * align_b:
            target = min(target, B // 2)
        tile_b = _pick_tile(B, max(target, align_b), align_b)
    assert B % tile_b == 0, (B, tile_b)

    vmem_cap = _vmem_cap_bytes()

    # ---- resident-W fast path decision --------------------------------------
    w_total_bytes = D * C_pad * w_bytes
    resident_vmem = (
        2 * tile_b * D * x_bytes        # x tile, double-buffered
        + 2 * w_total_bytes             # W (constant index; conservative 2x)
        + 2 * tile_b * C_pad * 4        # output tile, double-buffered
        + 2 * C_pad * 4                 # bias
    )
    use_resident = (
        not force_k_tiled
        and w_total_bytes <= min(16 << 20, vmem_cap // 4)
        and resident_vmem <= vmem_cap
    )

    if use_resident:
        vmem_limit = min(max(2 * resident_vmem, 4 << 20), vmem_cap)
        out_padded = pl.pallas_call(
            _fused_resident_kernel,
            out_shape=jax.ShapeDtypeStruct((B, C_pad), jnp.float32),
            grid_spec=pltpu.PrefetchScalarGridSpec(
                num_scalar_prefetch=0,
                grid=(B // tile_b,),
                in_specs=[
                    pl.BlockSpec(memory_space=pltpu.SMEM),          # temperature
                    pl.BlockSpec((tile_b, D), lambda i: (i, 0)),    # x tile
                    pl.BlockSpec((D, C_pad), lambda i: (0, 0)),     # resident W
                    pl.BlockSpec((1, C_pad), lambda i: (0, 0)),     # bias
                ],
                out_specs=pl.BlockSpec((tile_b, C_pad), lambda i: (i, 0)),
            ),
            compiler_params=pltpu.CompilerParams(
                dimension_semantics=("parallel",),
                vmem_limit_bytes=vmem_limit,
            ),
        )(temperature, x, w_pad, b_pad)
    else:
        # ---- K-tiled fallback for large D*C_pad ------------------------------
        if tile_k is None:
            tile_k = _pick_tile(D, 1024, _LANE)
        assert D % tile_k == 0, (D, tile_k)

        ktiled_vmem = (
            2 * tile_b * tile_k * x_bytes
            + 2 * tile_k * C_pad * w_bytes
            + 2 * tile_b * C_pad * 4
            + 2 * C_pad * 4
        )
        vmem_limit = min(max(2 * ktiled_vmem, 4 << 20), vmem_cap)

        out_padded = pl.pallas_call(
            _fused_ktiled_kernel,
            out_shape=jax.ShapeDtypeStruct((B, C_pad), jnp.float32),
            grid_spec=pltpu.PrefetchScalarGridSpec(
                num_scalar_prefetch=0,
                grid=(B // tile_b, D // tile_k),     # reduction axis last
                in_specs=[
                    pl.BlockSpec(memory_space=pltpu.SMEM),                # temperature
                    pl.BlockSpec((tile_b, tile_k), lambda i, k: (i, k)),  # x tile
                    pl.BlockSpec((tile_k, C_pad), lambda i, k: (k, 0)),   # W tile
                    pl.BlockSpec((1, C_pad), lambda i, k: (0, 0)),        # bias
                ],
                out_specs=pl.BlockSpec((tile_b, C_pad), lambda i, k: (i, 0)),
            ),
            compiler_params=pltpu.CompilerParams(
                dimension_semantics=("parallel", "arbitrary"),
                vmem_limit_bytes=vmem_limit,
            ),
        )(temperature, x, w_pad, b_pad)

    if num_classes == C_pad:
        return out_padded
    return out_padded[:, :num_classes]


# TODO(synk): set_temperature (LBFGS calibration over a validation DataLoader)
# and _ECELoss (host-side confidence binning with data-dependent control flow)
# are calibration utilities, not a kernel hot path; only forward /
# temperature_scale is implemented in Pallas.


# --------------------------------------------------------------------------
# Demo / correctness check
# --------------------------------------------------------------------------
if __name__ == "__main__":
    key = jax.random.PRNGKey(0)
    kx, kw, kb = jax.random.split(key, 3)

    # Small image-like input, flattened before the synthesized linear classifier.
    B, Cch, H, Wd = 16, 4, 16, 16         # batch, channels, spatial
    C = 10                                # number of classes
    x_img = jax.random.normal(kx, (B, Cch, H, Wd), dtype=jnp.float32)
    x = x_img.reshape(B, -1)              # [B, D], D = 1024
    D = x.shape[1]

    w = jax.random.normal(kw, (D, C), dtype=jnp.float32) * 0.05
    b = jax.random.normal(kb, (C,), dtype=jnp.float32) * 0.01
    # nn.Parameter(torch.ones(1) * 1.5)
    temperature = jnp.ones((1,), dtype=jnp.float32) * 1.5

    # One-time parameter prep (padding + cast hoisted out of the forward).
    w_pad, b_pad, num_classes = prepare_temperature_params(w, b)

    ref = (
        jnp.dot(x, w, precision=jax.lax.Precision.HIGHEST) + b[None, :]
    ) / temperature[0]

    # --- resident-W fast path (default) --------------------------------------
    out = jax.block_until_ready(
        model_with_temperature_forward(x, w_pad, b_pad, temperature, num_classes)
    )
    assert out.shape == (B, C), out.shape
    assert jnp.allclose(out, ref, atol=1e-3, rtol=1e-3), "resident path mismatch"

    # --- K-tiled fallback path (exercised for correctness) --------------------
    out_kt = jax.block_until_ready(
        model_with_temperature_forward(
            x, w_pad, b_pad, temperature, num_classes,
            force_k_tiled=True, tile_k=256,
        )
    )
    assert out_kt.shape == (B, C), out_kt.shape
    assert jnp.allclose(out_kt, ref, atol=1e-3, rtol=1e-3), "k-tiled path mismatch"

    print("KERNEL_OK")
</pallas_src>

<mosaic_0001>
module attributes {stable_mosaic.version = 11 : i64} {
  func.func @_fused_resident_kernel(%arg0: i32, %arg1: memref<1xf32, #tpu.memory_space<smem>>, %arg2: memref<8x1024xf32, #tpu.memory_space<vmem>>, %arg3: memref<1024x128xf32, #tpu.memory_space<vmem>>, %arg4: memref<1x128xf32, #tpu.memory_space<vmem>>, %arg5: memref<8x128xf32, #tpu.memory_space<vmem>>) attributes {dimension_semantics = [#tpu.dimension_semantics<parallel>], iteration_bounds = array<i64: 2>, scalar_prefetch = 0 : i64, scratch_operands = 0 : i64, tpu.core_type = #tpu.core_type<tc>, window_params = [{transform_indices = @transform_0, window_bounds = array<i64: 1>}, {transform_indices = @transform_1, window_bounds = array<i64: 8, 1024>}, {pipeline_mode = #tpu.pipeline_mode<synchronous>, transform_indices = @transform_2, window_bounds = array<i64: 1024, 128>}, {pipeline_mode = #tpu.pipeline_mode<synchronous>, transform_indices = @transform_3, window_bounds = array<i64: 1, 128>}, {transform_indices = @transform_4, window_bounds = array<i64: 8, 128>}]} {
    %c0 = arith.constant 0 : index
    %0 = memref.load %arg1[%c0] : memref<1xf32, #tpu.memory_space<smem>>
    %cst = arith.constant 1.000000e+00 : f32
    %1 = arith.divf %cst, %0 : f32
    %c0_0 = arith.constant 0 : index
    %c0_1 = arith.constant 0 : index
    %2 = vector.load %arg2[%c0_0, %c0_1] : memref<8x1024xf32, #tpu.memory_space<vmem>>, vector<8x1024xf32>
    %c0_2 = arith.constant 0 : index
    %c0_3 = arith.constant 0 : index
    %3 = vector.load %arg3[%c0_2, %c0_3] : memref<1024x128xf32, #tpu.memory_space<vmem>>, vector<1024x128xf32>
    %cst_4 = arith.constant dense<0.000000e+00> : vector<8x128xf32>
    %4 = tpu.matmul %2, %3, %cst_4 {dimension_numbers = #tpu.dot_dimension_numbers<[1], [0], [0], [1], [0, 0, 1, 1], [], []>} : vector<8x1024xf32>, vector<1024x128xf32>, vector<8x128xf32> -> vector<8x128xf32>
    %c0_5 = arith.constant 0 : index
    %c0_6 = arith.constant 0 : index
    %5 = vector.load %arg4[%c0_5, %c0_6] : memref<1x128xf32, #tpu.memory_space<vmem>>, vector<1x128xf32>
    %6 = vector.broadcast %5 : vector<1x128xf32> to vector<8x128xf32>
    %7 = arith.addf %4, %6 : vector<8x128xf32>
    %8 = vector.broadcast %1 : f32 to vector<8x128xf32>
    %9 = arith.mulf %7, %8 : vector<8x128xf32>
    %c0_7 = arith.constant 0 : index
    %c0_8 = arith.constant 0 : index
    %10 = vector.load %arg5[%c0_7, %c0_8] : memref<8x128xf32, #tpu.memory_space<vmem>>, vector<8x128xf32>
    tpu.vector_store %arg5[%c0_7, %c0_8], %9 {strides = array<i32>} : memref<8x128xf32, #tpu.memory_space<vmem>>, vector<8x128xf32>,
    return
  }
  func.func @transform_0(%arg0: i32) -> i32 {
    %c0_i32 = arith.constant 0 : i32
    %c0_i32_0 = arith.constant 0 : i32
    return %c0_i32 : i32
  }
  func.func @transform_1(%arg0: i32) -> (i32, i32) {
    %c0_i32 = arith.constant 0 : i32
    %c0_i32_0 = arith.constant 0 : i32
    return %arg0, %c0_i32 : i32, i32
  }
  func.func @transform_2(%arg0: i32) -> (i32, i32) {
    %c0_i32 = arith.constant 0 : i32
    %c0_i32_0 = arith.constant 0 : i32
    %c0_i32_1 = arith.constant 0 : i32
    return %c0_i32, %c0_i32_0 : i32, i32
  }
  func.func @transform_3(%arg0: i32) -> (i32, i32) {
    %c0_i32 = arith.constant 0 : i32
    %c0_i32_0 = arith.constant 0 : i32
    %c0_i32_1 = arith.constant 0 : i32
    return %c0_i32, %c0_i32_0 : i32, i32
  }
  func.func @transform_4(%arg0: i32) -> (i32, i32) {
    %c0_i32 = arith.constant 0 : i32
    %c0_i32_0 = arith.constant 0 : i32
    return %arg0, %c0_i32 : i32, i32
  }
}

</mosaic_0001>

<llo_original>
// kernel: tpu_custom_call.1
$region0: #{tpu_custom_call.1}
  #allocation0 [shape = 'u32[]', space=smem, size = 0x4, offset = 0x4, fixed_abs, tag = 'smem constant byte address 0x4 - core index']
  #allocation1 [shape = 'u32[144,128]{1,0:T(1,128)}', space=vmem, size = 0x12000, scoped, tag = 'internal scratch']
  #allocation2 [shape = 'f32[1]{0:T(128)S(6)}', space=smem, size = 0x200, scoped, tag = 'scoped memory for tpu_custom_call.1']
  %s0 = inlined_call_operand.<no memory space> [shape: f32[1], index: 0, kind: input, shape index: {}]
  %s1 = inlined_call_operand.hbm [shape: f32[16,1024], index: 1, kind: input, shape index: {}]
  %s2 = inlined_call_operand.hbm [shape: f32[1024,128], index: 2, kind: input, shape index: {}]
  %s3 = inlined_call_operand.vmem [shape: f32[1,128], index: 3, kind: input, shape index: {}]
  %s4 = inlined_call_operand.hbm [shape: f32[16,128], index: 4, kind: output, shape index: {}]
  %s5 = sld [smem:[#allocation0]]
  $region57: #{tpu_custom_call.1} parent=0
    _
  %s7 = ssub.s32 1, %s5
  %s8 = scalar_select 0, %s7, %s5
  %9 = sst [smem:[#allocation2]] %s0
  $region1: #{tpu_custom_call.1} parent=0
    #allocation3 [shape = 'u8[65536]{0}', space=vmem, size = 0x10000, scoped, tag = 'input window, operand 1']
    #allocation4 [shape = 's32[2]{0}', space=sflag, size = 0x8, scoped, tag = 'scoped memory for tpu_custom_call.1']
    #allocation5 [shape = 's32[2]{0}', space=sflag, size = 0x8, scoped, tag = 'scoped memory for tpu_custom_call.1']
    #allocation6 [shape = 'u8[524288]{0}', space=vmem, size = 0x80000, scoped, tag = 'input window, operand 2, single buffered']
    #allocation7 [shape = 's32[1]{0}', space=sflag, size = 0x4, scoped, tag = 'scoped memory for tpu_custom_call.1']
    #allocation8 [shape = 'u8[8192]{0}', space=vmem, size = 0x2000, scoped, tag = 'output window, operand 0']
    %10 = vsyncpa [#allocation4], 0
    %s11 = scalar_lea.sflag [#allocation4], 1
    %12 = vsyncpa %s11, 0
    %13 = vsyncpa [#allocation7], 0
    %14 = vsyncpa [#allocation5], 0
    %s15 = scalar_lea.sflag [#allocation5], 1
    %16 = vsyncpa %s15, 0
    loop: start=0, step=1, limit=4
    $region2: #{tpu_custom_call.1} parent=1 // loop_pre_header
      _
    $region3: #{tpu_custom_call.1} parent=1 // loop_header
      %s18 = sphi 0, %s22
      %p19 = scmp.ge.s32.totalorder %s18, 4
      %s26 = sphi 0, %s26
      %s28 = sphi 0, %s26
      %s29 = sphi 0, %s28
      %s43 = sphi 0, %s29
      %s49 = sphi 0, %s51
      %s52 = sphi 0, %s49
      %s53 = sphi 0, %s52
      %s69 = sphi 0, %s53
      %s73 = sphi 0, %s73
      %s75 = sphi 0, %s73
      %s76 = sphi 0, %s75
      %s90 = sphi 0, %s76
      %s94 = sphi 0, %s94
      %s96 = sphi 0, %s94
      %s97 = sphi 0, %s96
      %s111 = sphi 0, %s97
      %s117 = sphi 0, %s119
      %s120 = sphi 0, %s117
      %s121 = sphi 0, %s120
      %s137 = sphi 0, %s121
    $region4: #{tpu_custom_call.1} parent=1 // loop_header_branch
      %21 = sbr.rel (%p19) target = $region8
    $region5: #{tpu_custom_call.1} parent=1 // loop_body
      %s23 = ssub.s32 %s18, 1
      %s24 = ssub.s32 %s18, 2
      %s25 = sadd.s32 %s18, 1
      %s27 = sadd.s32 %s26, 1
      %p30 = scmp.eq.s32.totalorder %s18, 1
      %p31 = scmp.ne.s32.totalorder %s26, %s28
      %p32 = scmp.eq.s32.totalorder %s18, 0
      %p33 = por %p31, %p32
      %p34 = scmp.ne.s32.totalorder %s26, %s28
      %p35 = scmp.eq.s32.totalorder %s23, 1
      %p36 = por %p34, %p35
      %p37 = scmp.ne.s32.totalorder %s28, %s29
      %p38 = scmp.eq.s32.totalorder %s23, 0
      %p39 = por %p37, %p38
      %p40 = scmp.ne.s32.totalorder %s28, %s29
      %p41 = scmp.eq.s32.totalorder %s24, 1
      %p42 = por %p40, %p41
      %p44 = scmp.ne.s32.totalorder %s29, %s43
      %p45 = scmp.eq.s32.totalorder %s24, 0
      %p46 = por %p44, %p45
      %s47 = ssub.s32 %s18, %s25
      %p48 = scmp.eq.s32.totalorder %s47, 0
      %s50 = sadd.s32 %s49, 1
      %s51 = scalar_select %p48, %s49, %s50
      %p54 = pneg %p48
      %p55 = scmp.eq.s32.totalorder %s18, 1
      %p56 = por %p54, %p55
      %p57 = scmp.ne.s32.totalorder %s49, %s52
      %p58 = scmp.eq.s32.totalorder %s18, 0
      %p59 = por %p57, %p58
      %p60 = scmp.ne.s32.totalorder %s49, %s52
      %p61 = scmp.eq.s32.totalorder %s23, 1
      %p62 = por %p60, %p61
      %p63 = scmp.ne.s32.totalorder %s52, %s53
      %p64 = scmp.eq.s32.totalorder %s23, 0
      %p65 = por %p63, %p64
      %p66 = scmp.ne.s32.totalorder %s52, %s53
      %p67 = scmp.eq.s32.totalorder %s24, 1
      %p68 = por %p66, %p67
      %p70 = scmp.ne.s32.totalorder %s53, %s69
      %p71 = scmp.eq.s32.totalorder %s24, 0
      %p72 = por %p70, %p71
      %s74 = sadd.s32 %s73, 1
      %p77 = scmp.eq.s32.totalorder %s18, 1
      %p78 = scmp.ne.s32.totalorder %s73, %s75
      %p79 = scmp.eq.s32.totalorder %s18, 0
      %p80 = por %p78, %p79
      %p81 = scmp.ne.s32.totalorder %s73, %s75
      %p82 = scmp.eq.s32.totalorder %s23, 1
      %p83 = por %p81, %p82
      %p84 = scmp.ne.s32.totalorder %s75, %s76
      %p85 = scmp.eq.s32.totalorder %s23, 0
      %p86 = por %p84, %p85
      %p87 = scmp.ne.s32.totalorder %s75, %s76
      %p88 = scmp.eq.s32.totalorder %s24, 1
      %p89 = por %p87, %p88
      %p91 = scmp.ne.s32.totalorder %s76, %s90
      %p92 = scmp.eq.s32.totalorder %s24, 0
      %p93 = por %p91, %p92
      %s95 = sadd.s32 %s94, 1
      %p98 = scmp.eq.s32.totalorder %s18, 1
      %p99 = scmp.ne.s32.totalorder %s94, %s96
      %p100 = scmp.eq.s32.totalorder %s18, 0
      %p101 = por %p99, %p100
      %p102 = scmp.ne.s32.totalorder %s94, %s96
      %p103 = scmp.eq.s32.totalorder %s23, 1
      %p104 = por %p102, %p103
      %p105 = scmp.ne.s32.totalorder %s96, %s97
      %p106 = scmp.eq.s32.totalorder %s23, 0
      %p107 = por %p105, %p106
      %p108 = scmp.ne.s32.totalorder %s96, %s97
      %p109 = scmp.eq.s32.totalorder %s24, 1
      %p110 = por %p108, %p109
      %p112 = scmp.ne.s32.totalorder %s97, %s111
      %p113 = scmp.eq.s32.totalorder %s24, 0
      %p114 = por %p112, %p113
      %s115 = ssub.s32 %s18, %s25
      %p116 = scmp.eq.s32.totalorder %s115, 0
      %s118 = sadd.s32 %s117, 1
      %s119 = scalar_select %p116, %s117, %s118
      %p122 = pneg %p116
      %p123 = scmp.eq.s32.totalorder %s18, 1
      %p124 = por %p122, %p123
      %p125 = scmp.ne.s32.totalorder %s117, %s120
      %p126 = scmp.eq.s32.totalorder %s18, 0
      %p127 = por %p125, %p126
      %p128 = scmp.ne.s32.totalorder %s117, %s120
      %p129 = scmp.eq.s32.totalorder %s23, 1
      %p130 = por %p128, %p129
      %p131 = scmp.ne.s32.totalorder %s120, %s121
      %p132 = scmp.eq.s32.totalorder %s23, 0
      %p133 = por %p131, %p132
      %p134 = scmp.ne.s32.totalorder %s120, %s121
      %p135 = scmp.eq.s32.totalorder %s24, 1
      %p136 = por %p134, %p135
      %p138 = scmp.ne.s32.totalorder %s121, %s137
      %p139 = scmp.eq.s32.totalorder %s24, 0
      %p140 = por %p138, %p139
      %p141 = scmp.le.s32.totalorder 1, %s18
      %p142 = scmp.lt.s32.totalorder %s18, 3
      %p143 = pnand %p141, %p142
      %p144 = pneg %p143
      // Predicated region
      $region9: #{tpu_custom_call.1} parent=5 // pred_check
        _
      $region10: #{tpu_custom_call.1} parent=5 // pred_check_branch
        %146 = sbr.rel (%p143) target = $region12
      $region11: #{tpu_custom_call.1} parent=5 // pred_region
        %s147 = ssub.s32 %s18, 1
        // Predicated region
        $region13: #{tpu_custom_call.1} parent=11 // pred_check
          %p148 = pneg %p39
        $region14: #{tpu_custom_call.1} parent=11 // pred_check_branch
          %150 = sbr.rel (%p148) target = $region16
        $region15: #{tpu_custom_call.1} parent=11 // pred_region
          _
        $region16: #{tpu_custom_call.1} parent=11 // pred_fallthru
          _
        // Predicated region
        $region17: #{tpu_custom_call.1} parent=11 // pred_check
          %p151 = pneg %p86
        $region18: #{tpu_custom_call.1} parent=11 // pred_check_branch
          %153 = sbr.rel (%p151) target = $region20
        $region19: #{tpu_custom_call.1} parent=11 // pred_region
          %s155 = ssub.s32 16384, 16384
          %156 = vsyncadd [#allocation7], %s155
          %s157 = sshll.u32 [#allocation6], 4
          %s158 = int_to_ptr.vmem [resolvable:$true] %s157
          %163 = dma.hbm_to_vmem [thread:$0]  %s2, 16384, %s158, [#allocation7], 128, 128, 8
        $region20: #{tpu_custom_call.1} parent=11 // pred_fallthru
          _
        // Predicated region
        $region21: #{tpu_custom_call.1} parent=11 // pred_check
          %p164 = pneg %p107
        $region22: #{tpu_custom_call.1} parent=11 // pred_check_branch
          %166 = sbr.rel (%p164) target = $region24
        $region23: #{tpu_custom_call.1} parent=11 // pred_region
          _
        $region24: #{tpu_custom_call.1} parent=11 // pred_fallthru
          _
      $region12: #{tpu_custom_call.1} parent=5 // pred_fallthru
        _
      %p167 = scmp.lt.s32.totalorder %s18, 2
      // Predicated region
      $region25: #{tpu_custom_call.1} parent=5 // pred_check
        %p168 = pneg %p167
      $region26: #{tpu_custom_call.1} parent=5 // pred_check_branch
        %170 = sbr.rel (%p168) target = $region28
      $region27: #{tpu_custom_call.1} parent=5 // pred_region
        // Predicated region
        $region29: #{tpu_custom_call.1} parent=27 // pred_check
          %p171 = pneg %p59
        $region30: #{tpu_custom_call.1} parent=27 // pred_check_branch
          %173 = sbr.rel (%p171) target = $region32
        $region31: #{tpu_custom_call.1} parent=27 // pred_region
          %s174 = sand.u32 %s49, 1
          %s175 = scalar_lea.sflag [#allocation4], %s174
          %s176 = sand.u32 %s49, 1
          %s177 = smul.addr %s176, 64
          %s178 = scalar_lea.vmem [#allocation3], %s177
          %s180 = ssub.s32 1024, 1024
          %181 = vsyncadd %s175, %s180
          %s182 = smul.addr %s18, 8
          %s183 = smul.addr %s182, 128
          %s184 = scalar_lea.hbm %s1, %s183
          %s186 = sshll.u32 %s178, 4
          %s187 = int_to_ptr.vmem [resolvable:$true] %s186
          %189 = dma.hbm_to_vmem [thread:$0]  %s184, 1024, %s187, %s175
        $region32: #{tpu_custom_call.1} parent=27 // pred_fallthru
          _
      $region28: #{tpu_custom_call.1} parent=5 // pred_fallthru
        _
      %p190 = scmp.le.s32.totalorder 1, %s18
      %p191 = scmp.lt.s32.totalorder %s18, 3
      %p192 = pnand %p190, %p191
      %p193 = pneg %p192
      // Predicated region
      $region33: #{tpu_custom_call.1} parent=5 // pred_check
        _
      $region34: #{tpu_custom_call.1} parent=5 // pred_check_branch
        %195 = sbr.rel (%p192) target = $region36
      $region35: #{tpu_custom_call.1} parent=5 // pred_region
        %s196 = ssub.s32 %s18, 1
        %s197 = sand.u32 %s52, 1
        %s198 = scalar_lea.sflag [#allocation4], %s197
        %s199 = sand.u32 %s52, 1
        %s200 = smul.addr %s199, 64
        %s201 = scalar_lea.vmem [#allocation3], %s200
        // Predicated region
        $region37: #{tpu_custom_call.1} parent=35 // pred_check
          %p202 = pneg %p65
        $region38: #{tpu_custom_call.1} parent=35 // pred_check_branch
          %204 = sbr.rel (%p202) target = $region40
        $region39: #{tpu_custom_call.1} parent=35 // pred_region
          %205 = dma.done %s198, 1024
        $region40: #{tpu_custom_call.1} parent=35 // pred_fallthru
          _
        // Predicated region
        $region41: #{tpu_custom_call.1} parent=35 // pred_check
          %p206 = pneg %p86
        $region42: #{tpu_custom_call.1} parent=35 // pred_check_branch
          %208 = sbr.rel (%p206) target = $region44
        $region43: #{tpu_custom_call.1} parent=35 // pred_region
          %209 = dma.done [#allocation7], 16384
        $region44: #{tpu_custom_call.1} parent=35 // pred_fallthru
          _
        %p210 = pneg %p39
        %p211 = pneg %p36
        %s212 = sand.u32 %s52, 1
        %s213 = scalar_lea.sflag [#allocation4], %s212
        %s214 = sand.u32 %s52, 1
        %s215 = smul.addr %s214, 64
        %s216 = scalar_lea.vmem [#allocation3], %s215
        %p217 = pneg %p65
        %p218 = pneg %p62
        %p219 = pneg %p86
        %p220 = pneg %p83
        %p221 = pneg %p107
        %p222 = pneg %p104
        %p223 = pneg %p133
        %p224 = pneg %p130
        %s225 = sand.u32 %s120, 1
        %s226 = scalar_lea.sflag [#allocation5], %s225
        %s227 = sand.u32 %s120, 1
        %s228 = smul.addr %s227, 8
        %s229 = scalar_lea.vmem [#allocation8], %s228
        %s230 = sld [smem:[#allocation2]]
        %v231 = vstv %s230
        %v232 = vrcp.pop %v231
        %s233 = vtos %v232
        %v234 = vld [vmem:[%s201] sm:$0xff]
        %v235 = vld [vmem:[%s201 + $0x8] sm:$0xff]
        %v236 = vld [vmem:[%s201 + $0x10] sm:$0xff]
        %v237 = vld [vmem:[%s201 + $0x18] sm:$0xff]
        %v238 = vld [vmem:[%s201 + $0x20] sm:$0xff]
        %v239 = vld [vmem:[%s201 + $0x28] sm:$0xff]
        %v240 = vld [vmem:[%s201 + $0x30] sm:$0xff]
        %v241 = vld [vmem:[%s201 + $0x38] sm:$0xff]
        %v242 = vld [vmem:[#allocation6] sm:$0xff]
        %v243 = vld [vmem:[#allocation6 + $0x8] sm:$0xff]
        %v244 = vld [vmem:[#allocation6 + $0x10] sm:$0xff]
        %v245 = vld [vmem:[#allocation6 + $0x18] sm:$0xff]
        %v246 = vld [vmem:[#allocation6 + $0x20] sm:$0xff]
        %v247 = vld [vmem:[#allocation6 + $0x28] sm:$0xff]
        %v248 = vld [vmem:[#allocation6 + $0x30] sm:$0xff]
        %v249 = vld [vmem:[#allocation6 + $0x38] sm:$0xff]
        %v250 = vld [vmem:[#allocation6 + $0x40] sm:$0xff]
        %v251 = vld [vmem:[#allocation6 + $0x48] sm:$0xff]
        %v252 = vld [vmem:[#allocation6 + $0x50] sm:$0xff]
        %v253 = vld [vmem:[#allocation6 + $0x58] sm:$0xff]
        %v254 = vld [vmem:[#allocation6 + $0x60] sm:$0xff]
        %v255 = vld [vmem:[#allocation6 + $0x68] sm:$0xff]
        %v256 = vld [vmem:[#allocation6 + $0x70] sm:$0xff]
        %v257 = vld [vmem:[#allocation6 + $0x78] sm:$0xff]
        %v258 = vld [vmem:[#allocation6 + $0x80] sm:$0xff]
        %v259 = vld [vmem:[#allocation6 + $0x88] sm:$0xff]
        %v260 = vld [vmem:[#allocation6 + $0x90] sm:$0xff]
        %v261 = vld [vmem:[#allocation6 + $0x98] sm:$0xff]
        %v262 = vld [vmem:[#allocation6 + $0xa0] sm:$0xff]
        %v263 = vld [vmem:[#allocation6 + $0xa8] sm:$0xff]
        %v264 = vld [vmem:[#allocation6 + $0xb0] sm:$0xff]
        %v265 = vld [vmem:[#allocation6 + $0xb8] sm:$0xff]
        %v266 = vld [vmem:[#allocation6 + $0xc0] sm:$0xff]
        %v267 = vld [vmem:[#allocation6 + $0xc8] sm:$0xff]
        %v268 = vld [vmem:[#allocation6 + $0xd0] sm:$0xff]
        %v269 = vld [vmem:[#allocation6 + $0xd8] sm:$0xff]
        %v270 = vld [vmem:[#allocation6 + $0xe0] sm:$0xff]
        %v271 = vld [vmem:[#allocation6 + $0xe8] sm:$0xff]
        %v272 = vld [vmem:[#allocation6 + $0xf0] sm:$0xff]
        %v273 = vld [vmem:[#allocation6 + $0xf8] sm:$0xff]
        %v274 = vld [vmem:[#allocation6 + $0x100] sm:$0xff]
        %v275 = vld [vmem:[#allocation6 + $0x108] sm:$0xff]
        %v276 = vld [vmem:[#allocation6 + $0x110] sm:$0xff]
        %v277 = vld [vmem:[#allocation6 + $0x118] sm:$0xff]
        %v278 = vld [vmem:[#allocation6 + $0x120] sm:$0xff]
        %v279 = vld [vmem:[#allocation6 + $0x128] sm:$0xff]
        %v280 = vld [vmem:[#allocation6 + $0x130] sm:$0xff]
        %v281 = vld [vmem:[#allocation6 + $0x138] sm:$0xff]
        %v282 = vld [vmem:[#allocation6 + $0x140] sm:$0xff]
        %v283 = vld [vmem:[#allocation6 + $0x148] sm:$0xff]
        %v284 = vld [vmem:[#allocation6 + $0x150] sm:$0xff]
        %v285 = vld [vmem:[#allocation6 + $0x158] sm:$0xff]
        %v286 = vld [vmem:[#allocation6 + $0x160] sm:$0xff]
        %v287 = vld [vmem:[#allocation6 + $0x168] sm:$0xff]
        %v288 = vld [vmem:[#allocation6 + $0x170] sm:$0xff]
        %v289 = vld [vmem:[#allocation6 + $0x178] sm:$0xff]
        %v290 = vld [vmem:[#allocation6 + $0x180] sm:$0xff]
        %v291 = vld [vmem:[#allocation6 + $0x188] sm:$0xff]
        %v292 = vld [vmem:[#allocation6 + $0x190] sm:$0xff]
        %v293 = vld [vmem:[#allocation6 + $0x198] sm:$0xff]
        %v294 = vld [vmem:[#allocation6 + $0x1a0] sm:$0xff]
        %v295 = vld [vmem:[#allocation6 + $0x1a8] sm:$0xff]
        %v296 = vld [vmem:[#allocation6 + $0x1b0] sm:$0xff]
        %v297 = vld [vmem:[#allocation6 + $0x1b8] sm:$0xff]
        %v298 = vld [vmem:[#allocation6 + $0x1c0] sm:$0xff]
        %v299 = vld [vmem:[#allocation6 + $0x1c8] sm:$0xff]
        %v300 = vld [vmem:[#allocation6 + $0x1d0] sm:$0xff]
        %v301 = vld [vmem:[#allocation6 + $0x1d8] sm:$0xff]
        %v302 = vld [vmem:[#allocation6 + $0x1e0] sm:$0xff]
        %v303 = vld [vmem:[#allocation6 + $0x1e8] sm:$0xff]
        %v304 = vld [vmem:[#allocation6 + $0x1f0] sm:$0xff]
        %v305 = vld [vmem:[#allocation6 + $0x1f8] sm:$0xff]
        %v306 = vld [vmem:[#allocation6 + $0x200] sm:$0xff]
        %v307 = vld [vmem:[#allocation6 + $0x208] sm:$0xff]
        %v308 = vld [vmem:[#allocation6 + $0x210] sm:$0xff]
        %v309 = vld [vmem:[#allocation6 + $0x218] sm:$0xff]
        %v310 = vld [vmem:[#allocation6 + $0x220] sm:$0xff]
        %v311 = vld [vmem:[#allocation6 + $0x228] sm:$0xff]
        %v312 = vld [vmem:[#allocation6 + $0x230] sm:$0xff]
        %v313 = vld [vmem:[#allocation6 + $0x238] sm:$0xff]
        %v314 = vld [vmem:[#allocation6 + $0x240] sm:$0xff]
        %v315 = vld [vmem:[#allocation6 + $0x248] sm:$0xff]
        %v316 = vld [vmem:[#allocation6 + $0x250] sm:$0xff]
        %v317 = vld [vmem:[#allocation6 + $0x258] sm:$0xff]
        %v318 = vld [vmem:[#allocation6 + $0x260] sm:$0xff]
        %v319 = vld [vmem:[#allocation6 + $0x268] sm:$0xff]
        %v320 = vld [vmem:[#allocation6 + $0x270] sm:$0xff]
        %v321 = vld [vmem:[#allocation6 + $0x278] sm:$0xff]
        %v322 = vld [vmem:[#allocation6 + $0x280] sm:$0xff]
        %v323 = vld [vmem:[#allocation6 + $0x288] sm:$0xff]
        %v324 = vld [vmem:[#allocation6 + $0x290] sm:$0xff]
        %v325 = vld [vmem:[#allocation6 + $0x298] sm:$0xff]
        %v326 = vld [vmem:[#allocation6 + $0x2a0] sm:$0xff]
        %v327 = vld [vmem:[#allocation6 + $0x2a8] sm:$0xff]
        %v328 = vld [vmem:[#allocation6 + $0x2b0] sm:$0xff]
        %v329 = vld [vmem:[#allocation6 + $0x2b8] sm:$0xff]
        %v330 = vld [vmem:[#allocation6 + $0x2c0] sm:$0xff]
        %v331 = vld [vmem:[#allocation6 + $0x2c8] sm:$0xff]
        %v332 = vld [vmem:[#allocation6 + $0x2d0] sm:$0xff]
        %v333 = vld [vmem:[#allocation6 + $0x2d8] sm:$0xff]
        %v334 = vld [vmem:[#allocation6 + $0x2e0] sm:$0xff]
        %v335 = vld [vmem:[#allocation6 + $0x2e8] sm:$0xff]
        %v336 = vld [vmem:[#allocation6 + $0x2f0] sm:$0xff]
        %v337 = vld [vmem:[#allocation6 + $0x2f8] sm:$0xff]
        %v338 = vld [vmem:[#allocation6 + $0x300] sm:$0xff]
        %v339 = vld [vmem:[#allocation6 + $0x308] sm:$0xff]
        %v340 = vld [vmem:[#allocation6 + $0x310] sm:$0xff]
        %v341 = vld [vmem:[#allocation6 + $0x318] sm:$0xff]
        %v342 = vld [vmem:[#allocation6 + $0x320] sm:$0xff]
        %v343 = vld [vmem:[#allocation6 + $0x328] sm:$0xff]
        %v344 = vld [vmem:[#allocation6 + $0x330] sm:$0xff]
        %v345 = vld [vmem:[#allocation6 + $0x338] sm:$0xff]
        %v346 = vld [vmem:[#allocation6 + $0x340] sm:$0xff]
        %v347 = vld [vmem:[#allocation6 + $0x348] sm:$0xff]
        %v348 = vld [vmem:[#allocation6 + $0x350] sm:$0xff]
        %v349 = vld [vmem:[#allocation6 + $0x358] sm:$0xff]
        %v350 = vld [vmem:[#allocation6 + $0x360] sm:$0xff]
        %v351 = vld [vmem:[#allocation6 + $0x368] sm:$0xff]
        %v352 = vld [vmem:[#allocation6 + $0x370] sm:$0xff]
        %v353 = vld [vmem:[#allocation6 + $0x378] sm:$0xff]
        %v354 = vld [vmem:[#allocation6 + $0x380] sm:$0xff]
        %v355 = vld [vmem:[#allocation6 + $0x388] sm:$0xff]
        %v356 = vld [vmem:[#allocation6 + $0x390] sm:$0xff]
        %v357 = vld [vmem:[#allocation6 + $0x398] sm:$0xff]
        %v358 = vld [vmem:[#allocation6 + $0x3a0] sm:$0xff]
        %v359 = vld [vmem:[#allocation6 + $0x3a8] sm:$0xff]
        %v360 = vld [vmem:[#allocation6 + $0x3b0] sm:$0xff]
        %v361 = vld [vmem:[#allocation6 + $0x3b8] sm:$0xff]
        %v362 = vld [vmem:[#allocation6 + $0x3c0] sm:$0xff]
        %v363 = vld [vmem:[#allocation6 + $0x3c8] sm:$0xff]
        %v364 = vld [vmem:[#allocation6 + $0x3d0] sm:$0xff]
        %v365 = vld [vmem:[#allocation6 + $0x3d8] sm:$0xff]
        %v366 = vld [vmem:[#allocation6 + $0x3e0] sm:$0xff]
        %v367 = vld [vmem:[#allocation6 + $0x3e8] sm:$0xff]
        %v368 = vld [vmem:[#allocation6 + $0x3f0] sm:$0xff]
        %v369 = vld [vmem:[#allocation6 + $0x3f8] sm:$0xff]
        %v370 = vld [vmem:[%s3] sm:$0x1]
        %v372 = vlaneseq
        %v373 = vshrl.u32 %v372, 7
        %v374 = vsub.s32 0, %v373
        %v375 = vrot.slane %v370, %v374
        %377 = vmatprep.subr.mxu0 0.0
        %378 = vmatpush1.msra.mxu0 %v242
        %379 = vmatprep.subr.mxu0 0.0
        %380 = vmatpush1.msra.mxu0 %v243
        %381 = vmatprep.subr.mxu0 0.0
        %382 = vmatpush1.msra.mxu0 %v244
        %383 = vmatprep.subr.mxu0 0.0
        %384 = vmatpush1.msra.mxu0 %v245
        %385 = vmatprep.subr.mxu0 0.0
        %386 = vmatpush1.msra.mxu0 %v246
        %387 = vmatprep.subr.mxu0 0.0
        %388 = vmatpush1.msra.mxu0 %v247
        %389 = vmatprep.subr.mxu0 0.0
        %390 = vmatpush1.msra.mxu0 %v248
        %391 = vmatprep.subr.mxu0 0.0
        %392 = vmatpush1.msra.mxu0 %v249
        %393 = vmatprep.subr.mxu0 0.0
        %394 = vmatpush1.msra.mxu0 %v250
        %395 = vmatprep.subr.mxu0 0.0
        %396 = vmatpush1.msra.mxu0 %v251
        %397 = vmatprep.subr.mxu0 0.0
        %398 = vmatpush1.msra.mxu0 %v252
        %399 = vmatprep.subr.mxu0 0.0
        %400 = vmatpush1.msra.mxu0 %v253
        %401 = vmatprep.subr.mxu0 0.0
        %402 = vmatpush1.msra.mxu0 %v254
        %403 = vmatprep.subr.mxu0 0.0
        %404 = vmatpush1.msra.mxu0 %v255
        %405 = vmatprep.subr.mxu0 0.0
        %406 = vmatpush1.msra.mxu0 %v256
        %407 = vmatprep.subr.mxu0 0.0
        %408 = vmatpush1.msra.mxu0 %v257
        %409 = vmatprep.subr.mxu0 0.0
        %410 = vmatpush1.msra.mxu0 %v258
        %411 = vmatprep.subr.mxu0 0.0
        %412 = vmatpush1.msra.mxu0 %v259
        %413 = vmatprep.subr.mxu0 0.0
        %414 = vmatpush1.msra.mxu0 %v260
        %415 = vmatprep.subr.mxu0 0.0
        %416 = vmatpush1.msra.mxu0 %v261
        %417 = vmatprep.subr.mxu0 0.0
        %418 = vmatpush1.msra.mxu0 %v262
        %419 = vmatprep.subr.mxu0 0.0
        %420 = vmatpush1.msra.mxu0 %v263
        %421 = vmatprep.subr.mxu0 0.0
        %422 = vmatpush1.msra.mxu0 %v264
        %423 = vmatprep.subr.mxu0 0.0
        %424 = vmatpush1.msra.mxu0 %v265
        %425 = vmatprep.subr.mxu0 0.0
        %426 = vmatpush1.msra.mxu0 %v266
        %427 = vmatprep.subr.mxu0 0.0
        %428 = vmatpush1.msra.mxu0 %v267
        %429 = vmatprep.subr.mxu0 0.0
        %430 = vmatpush1.msra.mxu0 %v268
        %431 = vmatprep.subr.mxu0 0.0
        %432 = vmatpush1.msra.mxu0 %v269
        %433 = vmatprep.subr.mxu0 0.0
        %434 = vmatpush1.msra.mxu0 %v270
        %435 = vmatprep.subr.mxu0 0.0
        %436 = vmatpush1.msra.mxu0 %v271
        %437 = vmatprep.subr.mxu0 0.0
        %438 = vmatpush1.msra.mxu0 %v272
        %439 = vmatprep.subr.mxu0 0.0
        %440 = vmatpush1.msra.mxu0 %v273
        %441 = vmatprep.mubr.f32.mxu0 %v235
        %442 = vmatmul.mubr.f32.gmra.mrb[0].mxu0 %v234
        %v443 = vpop.f32.mrb[0].mxu0
        %v444 = vadd.f32 %v375, %v443
        %v445 = vpop.f32.mrb[0].mxu0
        %446 = vdwg.mxu0
        %447 = vmatprep.subr.mxu0 0.0
        %448 = vmatpush1.msra.mxu0 %v274
        %449 = vmatprep.subr.mxu0 0.0
        %450 = vmatpush1.msra.mxu0 %v275
        %451 = vmatprep.subr.mxu0 0.0
        %452 = vmatpush1.msra.mxu0 %v276
        %453 = vmatprep.subr.mxu0 0.0
        %454 = vmatpush1.msra.mxu0 %v277
        %455 = vmatprep.subr.mxu0 0.0
        %456 = vmatpush1.msra.mxu0 %v278
        %457 = vmatprep.subr.mxu0 0.0
        %458 = vmatpush1.msra.mxu0 %v279
        %459 = vmatprep.subr.mxu0 0.0
        %460 = vmatpush1.msra.mxu0 %v280
        %461 = vmatprep.subr.mxu0 0.0
        %462 = vmatpush1.msra.mxu0 %v281
        %463 = vmatprep.subr.mxu0 0.0
        %464 = vmatpush1.msra.mxu0 %v282
        %465 = vmatprep.subr.mxu0 0.0
        %466 = vmatpush1.msra.mxu0 %v283
        %467 = vmatprep.subr.mxu0 0.0
        %468 = vmatpush1.msra.mxu0 %v284
        %469 = vmatprep.subr.mxu0 0.0
        %470 = vmatpush1.msra.mxu0 %v285
        %471 = vmatprep.subr.mxu0 0.0
        %472 = vmatpush1.msra.mxu0 %v286
        %473 = vmatprep.subr.mxu0 0.0
        %474 = vmatpush1.msra.mxu0 %v287
        %475 = vmatprep.subr.mxu0 0.0
        %476 = vmatpush1.msra.mxu0 %v288
        %477 = vmatprep.subr.mxu0 0.0
        %478 = vmatpush1.msra.mxu0 %v289
        %479 = vmatprep.subr.mxu0 0.0
        %480 = vmatpush1.msra.mxu0 %v290
        %481 = vmatprep.subr.mxu0 0.0
        %482 = vmatpush1.msra.mxu0 %v291
        %483 = vmatprep.subr.mxu0 0.0
        %484 = vmatpush1.msra.mxu0 %v292
        %485 = vmatprep.subr.mxu0 0.0
        %486 = vmatpush1.msra.mxu0 %v293
        %487 = vmatprep.subr.mxu0 0.0
        %488 = vmatpush1.msra.mxu0 %v294
        %489 = vmatprep.subr.mxu0 0.0
        %490 = vmatpush1.msra.mxu0 %v295
        %491 = vmatprep.subr.mxu0 0.0
        %492 = vmatpush1.msra.mxu0 %v296
        %493 = vmatprep.subr.mxu0 0.0
        %494 = vmatpush1.msra.mxu0 %v297
        %495 = vmatprep.subr.mxu0 0.0
        %496 = vmatpush1.msra.mxu0 %v298
        %497 = vmatprep.subr.mxu0 0.0
        %498 = vmatpush1.msra.mxu0 %v299
        %499 = vmatprep.subr.mxu0 0.0
        %500 = vmatpush1.msra.mxu0 %v300
        %501 = vmatprep.subr.mxu0 0.0
        %502 = vmatpush1.msra.mxu0 %v301
        %503 = vmatprep.subr.mxu0 0.0
        %504 = vmatpush1.msra.mxu0 %v302
        %505 = vmatprep.subr.mxu0 0.0
        %506 = vmatpush1.msra.mxu0 %v303
        %507 = vmatprep.subr.mxu0 0.0
        %508 = vmatpush1.msra.mxu0 %v304
        %509 = vmatprep.subr.mxu0 0.0
        %510 = vmatpush1.msra.mxu0 %v305
        %511 = vmatprep.mubr.f32.mxu0 %v237
        %512 = vmatmul.mubr.f32.gmra.mrb[0].mxu0 %v236
        %v513 = vpop.f32.mrb[0].mxu0
        %v514 = vadd.f32 %v444, %v513
        %v515 = vpop.f32.mrb[0].mxu0
        %516 = vdwg.mxu0
        %517 = vmatprep.subr.mxu0 0.0
        %518 = vmatpush1.msra.mxu0 %v306
        %519 = vmatprep.subr.mxu0 0.0
        %520 = vmatpush1.msra.mxu0 %v307
        %521 = vmatprep.subr.mxu0 0.0
        %522 = vmatpush1.msra.mxu0 %v308
        %523 = vmatprep.subr.mxu0 0.0
        %524 = vmatpush1.msra.mxu0 %v309
        %525 = vmatprep.subr.mxu0 0.0
        %526 = vmatpush1.msra.mxu0 %v310
        %527 = vmatprep.subr.mxu0 0.0
        %528 = vmatpush1.msra.mxu0 %v311
        %529 = vmatprep.subr.mxu0 0.0
        %530 = vmatpush1.msra.mxu0 %v312
        %531 = vmatprep.subr.mxu0 0.0
        %532 = vmatpush1.msra.mxu0 %v313
        %533 = vmatprep.subr.mxu0 0.0
        %534 = vmatpush1.msra.mxu0 %v314
        %535 = vmatprep.subr.mxu0 0.0
        %536 = vmatpush1.msra.mxu0 %v315
        %537 = vmatprep.subr.mxu0 0.0
        %538 = vmatpush1.msra.mxu0 %v316
        %539 = vmatprep.subr.mxu0 0.0
        %540 = vmatpush1.msra.mxu0 %v317
        %541 = vmatprep.subr.mxu0 0.0
        %542 = vmatpush1.msra.mxu0 %v318
        %543 = vmatprep.subr.mxu0 0.0
        %544 = vmatpush1.msra.mxu0 %v319
        %545 = vmatprep.subr.mxu0 0.0
        %546 = vmatpush1.msra.mxu0 %v320
        %547 = vmatprep.subr.mxu0 0.0
        %548 = vmatpush1.msra.mxu0 %v321
        %549 = vmatprep.subr.mxu0 0.0
        %550 = vmatpush1.msra.mxu0 %v322
        %551 = vmatprep.subr.mxu0 0.0
        %552 = vmatpush1.msra.mxu0 %v323
        %553 = vmatprep.subr.mxu0 0.0
        %554 = vmatpush1.msra.mxu0 %v324
        %555 = vmatprep.subr.mxu0 0.0
        %556 = vmatpush1.msra.mxu0 %v325
        %557 = vmatprep.subr.mxu0 0.0
        %558 = vmatpush1.msra.mxu0 %v326
        %559 = vmatprep.subr.mxu0 0.0
        %560 = vmatpush1.msra.mxu0 %v327
        %561 = vmatprep.subr.mxu0 0.0
        %562 = vmatpush1.msra.mxu0 %v328
        %563 = vmatprep.subr.mxu0 0.0
        %564 = vmatpush1.msra.mxu0 %v329
        %565 = vmatprep.subr.mxu0 0.0
        %566 = vmatpush1.msra.mxu0 %v330
        %567 = vmatprep.subr.mxu0 0.0
        %568 = vmatpush1.msra.mxu0 %v331
        %569 = vmatprep.subr.mxu0 0.0
        %570 = vmatpush1.msra.mxu0 %v332
        %571 = vmatprep.subr.mxu0 0.0
        %572 = vmatpush1.msra.mxu0 %v333
        %573 = vmatprep.subr.mxu0 0.0
        %574 = vmatpush1.msra.mxu0 %v334
        %575 = vmatprep.subr.mxu0 0.0
        %576 = vmatpush1.msra.mxu0 %v335
        %577 = vmatprep.subr.mxu0 0.0
        %578 = vmatpush1.msra.mxu0 %v336
        %579 = vmatprep.subr.mxu0 0.0
        %580 = vmatpush1.msra.mxu0 %v337
        %581 = vmatprep.mubr.f32.mxu0 %v239
        %582 = vmatmul.mubr.f32.gmra.mrb[0].mxu0 %v238
        %v583 = vpop.f32.mrb[0].mxu0
        %v584 = vadd.f32 %v514, %v583
        %v585 = vpop.f32.mrb[0].mxu0
        %586 = vdwg.mxu0
        %587 = vmatprep.subr.mxu0 0.0
        %588 = vmatpush1.msra.mxu0 %v338
        %589 = vmatprep.subr.mxu0 0.0
        %590 = vmatpush1.msra.mxu0 %v339
        %591 = vmatprep.subr.mxu0 0.0
        %592 = vmatpush1.msra.mxu0 %v340
        %593 = vmatprep.subr.mxu0 0.0
        %594 = vmatpush1.msra.mxu0 %v341
        %595 = vmatprep.subr.mxu0 0.0
        %596 = vmatpush1.msra.mxu0 %v342
        %597 = vmatprep.subr.mxu0 0.0
        %598 = vmatpush1.msra.mxu0 %v343
        %599 = vmatprep.subr.mxu0 0.0
        %600 = vmatpush1.msra.mxu0 %v344
        %601 = vmatprep.subr.mxu0 0.0
        %602 = vmatpush1.msra.mxu0 %v345
        %603 = vmatprep.subr.mxu0 0.0
        %604 = vmatpush1.msra.mxu0 %v346
        %605 = vmatprep.subr.mxu0 0.0
        %606 = vmatpush1.msra.mxu0 %v347
        %607 = vmatprep.subr.mxu0 0.0
        %608 = vmatpush1.msra.mxu0 %v348
        %609 = vmatprep.subr.mxu0 0.0
        %610 = vmatpush1.msra.mxu0 %v349
        %611 = vmatprep.subr.mxu0 0.0
        %612 = vmatpush1.msra.mxu0 %v350
        %613 = vmatprep.subr.mxu0 0.0
        %614 = vmatpush1.msra.mxu0 %v351
        %615 = vmatprep.subr.mxu0 0.0
        %616 = vmatpush1.msra.mxu0 %v352
        %617 = vmatprep.subr.mxu0 0.0
        %618 = vmatpush1.msra.mxu0 %v353
        %619 = vmatprep.subr.mxu0 0.0
        %620 = vmatpush1.msra.mxu0 %v354
        %621 = vmatprep.subr.mxu0 0.0
        %622 = vmatpush1.msra.mxu0 %v355
        %623 = vmatprep.subr.mxu0 0.0
        %624 = vmatpush1.msra.mxu0 %v356
        %625 = vmatprep.subr.mxu0 0.0
        %626 = vmatpush1.msra.mxu0 %v357
        %627 = vmatprep.subr.mxu0 0.0
        %628 = vmatpush1.msra.mxu0 %v358
        %629 = vmatprep.subr.mxu0 0.0
        %630 = vmatpush1.msra.mxu0 %v359
        %631 = vmatprep.subr.mxu0 0.0
        %632 = vmatpush1.msra.mxu0 %v360
        %633 = vmatprep.subr.mxu0 0.0
        %634 = vmatpush1.msra.mxu0 %v361
        %635 = vmatprep.subr.mxu0 0.0
        %636 = vmatpush1.msra.mxu0 %v362
        %637 = vmatprep.subr.mxu0 0.0
        %638 = vmatpush1.msra.mxu0 %v363
        %639 = vmatprep.subr.mxu0 0.0
        %640 = vmatpush1.msra.mxu0 %v364
        %641 = vmatprep.subr.mxu0 0.0
        %642 = vmatpush1.msra.mxu0 %v365
        %643 = vmatprep.subr.mxu0 0.0
        %644 = vmatpush1.msra.mxu0 %v366
        %645 = vmatprep.subr.mxu0 0.0
        %646 = vmatpush1.msra.mxu0 %v367
        %647 = vmatprep.subr.mxu0 0.0
        %648 = vmatpush1.msra.mxu0 %v368
        %649 = vmatprep.subr.mxu0 0.0
        %650 = vmatpush1.msra.mxu0 %v369
        %651 = vmatprep.mubr.f32.mxu0 %v241
        %652 = vmatmul.mubr.f32.gmra.mrb[0].mxu0 %v240
        %v653 = vpop.f32.mrb[0].mxu0
        %v654 = vadd.f32 %v584, %v653
        %v655 = vpop.f32.mrb[0].mxu0
        %656 = vdwg.mxu0
        %v657 = vstv %s233
        %v658 = vmul.f32 %v654, %v657
        %659 = vst [vmem:[%s229] sm:$0xff] %v658
        %s660 = sand.u32 %s120, 1
        %s661 = scalar_lea.sflag [#allocation5], %s660
        %s662 = sand.u32 %s120, 1
        %s663 = smul.addr %s662, 8
        %s664 = scalar_lea.vmem [#allocation8], %s663
        // Predicated region
        $region45: #{tpu_custom_call.1} parent=35 // pred_check
          %p665 = pneg %p130
        $region46: #{tpu_custom_call.1} parent=35 // pred_check_branch
          %667 = sbr.rel (%p665) target = $region48
        $region47: #{tpu_custom_call.1} parent=35 // pred_region
          %s669 = ssub.s32 128, 128
          %670 = vsyncadd %s661, %s669
          %s671 = smul.addr %s23, 128
          %s672 = scalar_lea.hbm %s4, %s671
          %s674 = sshll.u32 %s664, 4
          %s675 = int_to_ptr.vmem [resolvable:$true] %s674
          %677 = dma.vmem_to_hbm [thread:$0]  %s675, 128, %s672, %s661
        $region48: #{tpu_custom_call.1} parent=35 // pred_fallthru
          _
      $region36: #{tpu_custom_call.1} parent=5 // pred_fallthru
        _
      %p678 = scmp.le.s32.totalorder 2, %s18
      // Predicated region
      $region49: #{tpu_custom_call.1} parent=5 // pred_check
        %p679 = pneg %p678
      $region50: #{tpu_custom_call.1} parent=5 // pred_check_branch
        %681 = sbr.rel (%p679) target = $region52
      $region51: #{tpu_custom_call.1} parent=5 // pred_region
        %s682 = ssub.s32 %s18, 2
        // Predicated region
        $region53: #{tpu_custom_call.1} parent=51 // pred_check
          %p683 = pneg %p136
        $region54: #{tpu_custom_call.1} parent=51 // pred_check_branch
          %685 = sbr.rel (%p683) target = $region56
        $region55: #{tpu_custom_call.1} parent=51 // pred_region
          %s686 = sand.u32 %s121, 1
          %s687 = scalar_lea.sflag [#allocation5], %s686
          %s688 = sand.u32 %s121, 1
          %s689 = smul.addr %s688, 8
          %s690 = scalar_lea.vmem [#allocation8], %s689
          %691 = dma.done %s687, 128
        $region56: #{tpu_custom_call.1} parent=51 // pred_fallthru
          _
      $region52: #{tpu_custom_call.1} parent=5 // pred_fallthru
        _
    $region6: #{tpu_custom_call.1} parent=1 // loop_footer
      %s22 = sadd.s32 1, %s18
    $region7: #{tpu_custom_call.1} parent=1 // loop_footer_branch
      %17 = sbr.rel target = $region3
    $region8: #{tpu_custom_call.1} parent=1 // loop_exit
      _
    %692 = vsyncpa [#allocation4], 1
    %s693 = scalar_lea.sflag [#allocation4], 1
    %694 = vsyncpa %s693, 1
    %695 = vsyncpa [#allocation7], 1
    %696 = vsyncpa [#allocation5], 1
    %s697 = scalar_lea.sflag [#allocation5], 1
    %698 = vsyncpa %s697, 1

</llo_original>
